<compile_context>
chip_gen: v7x
topology: tpu7x:2x2x1
jax: 0.10.0
libtpu: 0.0.40
codegen_flags: <defaults>
</compile_context>

<pallas_src>
import functools

import jax
import jax.numpy as jnp
import numpy as np
from jax.experimental import pallas as pl
from jax.experimental.pallas import tpu as pltpu

GEM_P = 3.0
GEM_EPS = 1e-6


# ---------------------------------------------------------------------------
# Kernel: per-tile sum of clamp(x, eps)^p, accumulated across spatial tiles,
#         finalized to (sum / HW)^(1/p) on the last tile.
# ---------------------------------------------------------------------------
def gem_kernel(x_ref, o_ref, acc_ref, *, inv_hw, p, eps):
    s = pl.program_id(1)

    @pl.when(s == 0)
    def _init():
        acc_ref[...] = jnp.zeros_like(acc_ref)

    x = x_ref[...].astype(jnp.float32)          # (C, TILE_HW), HW on lanes
    x = jnp.maximum(x, eps)
    if p == 3.0:
        xp = x * x * x                          # VPU-only fast path
    else:
        xp = jnp.exp(jnp.log(x) * p)            # general p via EUP (x >= eps > 0)
    acc_ref[...] += jnp.sum(xp, axis=-1, keepdims=True)   # (C, 1), f32 accumulation

    @pl.when(s == pl.num_programs(1) - 1)
    def _finalize():
        mean = acc_ref[...] * inv_hw                       # (C, 1), mean > 0
        pooled = jnp.exp(jnp.log(mean) * (1.0 / p))        # pow(1/p)
        o_ref[...] = pooled.astype(o_ref.dtype)


# ---------------------------------------------------------------------------
# Tile selection: largest multiple-of-128 divisor of HW whose (C, TILE_HW)
# block (double-buffered) stays comfortably inside every generation's VMEM.
# ---------------------------------------------------------------------------
def _pick_tile_hw(hw, c, itemsize, max_block_bytes=4 << 20):
    if hw % 128 != 0:
        # Odd spatial sizes: fall back to a single spatial block (still correct).
        return hw
    best = 128
    t = 128
    while t <= hw:
        if hw % t == 0 and c * t * itemsize <= max_block_bytes:
            best = t
        t += 128
    return best


# ---------------------------------------------------------------------------
# Wrapper
# ---------------------------------------------------------------------------
def gem(x_nchw, *, p=GEM_P, eps=GEM_EPS, tile_hw=None):
    """GeM pooling: (N, C, H, W) -> (N, C, 1, 1)."""
    n, c, h, w = x_nchw.shape
    hw = h * w
    x_flat = x_nchw.reshape(n, c, hw)           # contiguous reshape: no data movement

    if tile_hw is None:
        tile_hw = _pick_tile_hw(hw, c, jnp.dtype(x_nchw.dtype).itemsize)
    assert hw % tile_hw == 0, (hw, tile_hw)
    grid = (n, hw // tile_hw)

    kernel = functools.partial(gem_kernel, inv_hw=1.0 / float(hw),
                               p=float(p), eps=float(eps))

    out = pl.pallas_call(
        kernel,
        out_shape=jax.ShapeDtypeStruct((n, c, 1), x_nchw.dtype),
        grid=grid,
        in_specs=[
            # (C, TILE_HW) block per (image, spatial tile); batch dim squeezed.
            pl.BlockSpec((None, c, tile_hw), lambda i, s: (i, 0, s)),
        ],
        # Output block is revisited across the spatial axis (accumulator pattern);
        # it is only written under pl.when on the last spatial tile.
        out_specs=pl.BlockSpec((None, c, 1), lambda i, s: (i, 0, 0)),
        scratch_shapes=[pltpu.VMEM((c, 1), jnp.float32)],
        compiler_params=pltpu.CompilerParams(
            dimension_semantics=("parallel", "arbitrary")),
    )(x_flat)

    return out.reshape(n, c, 1, 1)


# ---------------------------------------------------------------------------
# Pure-JAX reference (mirrors the PyTorch forward)
# ---------------------------------------------------------------------------
def reference(x_nchw, p=GEM_P, eps=GEM_EPS):
    xc = jnp.power(jnp.clip(x_nchw, eps, None), p)
    pooled = jnp.power(jnp.mean(xc, axis=(2, 3), keepdims=True), 1.0 / p)
    return pooled


if __name__ == "__main__":
    N, C, H, W = 2, 4, 16, 16

    key = jax.random.PRNGKey(0)
    x = jax.random.normal(key, (N, C, H, W), dtype=jnp.float32)

    ref = jax.block_until_ready(reference(x))

    # Explicit 128-wide spatial tile -> 2 tiles per image: exercises the
    # cross-grid accumulation + pl.when epilogue path.
    out = jax.block_until_ready(gem(x, tile_hw=128))
    assert out.shape == (N, C, 1, 1), out.shape
    np.testing.assert_allclose(np.asarray(out), np.asarray(ref), rtol=1e-4, atol=1e-6)

    # Auto-selected tile (single 256-wide tile here): same result.
    out2 = jax.block_until_ready(gem(x))
    np.testing.assert_allclose(np.asarray(out2), np.asarray(ref), rtol=1e-4, atol=1e-6)

    print("KERNEL_OK")
</pallas_src>

<mosaic_0001>
module attributes {stable_mosaic.version = 11 : i64} {
  func.func @gem_kernel(%arg0: i32, %arg1: i32, %arg2: memref<1x4x128xf32, #tpu.memory_space<vmem>>, %arg3: memref<1x4x1xf32, #tpu.memory_space<vmem>>, %arg4: memref<4x1xf32, #tpu.memory_space<vmem>>) attributes {dimension_semantics = [#tpu.dimension_semantics<parallel>, #tpu.dimension_semantics<arbitrary>], iteration_bounds = array<i64: 2, 2>, scalar_prefetch = 0 : i64, scratch_operands = 1 : i64, tpu.core_type = #tpu.core_type<tc>, window_params = [{transform_indices = @transform_0, window_bounds = array<i64: 1, 4, 128>}, {transform_indices = @transform_1, window_bounds = array<i64: 1, 4, 1>}]} {
    %c0_i32 = arith.constant 0 : i32
    %0 = arith.cmpi eq, %arg1, %c0_i32 : i32
    %1 = arith.extui %0 : i1 to i32
    %c0_i32_0 = arith.constant 0 : i32
    %2 = arith.cmpi ne, %1, %c0_i32_0 : i32
    scf.if %2 {
      %cst_9 = arith.constant 0.000000e+00 : f32
      %17 = vector.broadcast %cst_9 : f32 to vector<4x1xf32>
      %c0_10 = arith.constant 0 : index
      %c0_11 = arith.constant 0 : index
      %18 = vector.load %arg4[%c0_10, %c0_11] : memref<4x1xf32, #tpu.memory_space<vmem>>, vector<4x1xf32>
      tpu.vector_store %arg4[%c0_10, %c0_11], %17 {strides = array<i32>} : memref<4x1xf32, #tpu.memory_space<vmem>>, vector<4x1xf32>,
    } else {
    }
    %c0 = arith.constant 0 : index
    %c0_1 = arith.constant 0 : index
    %c0_2 = arith.constant 0 : index
    %3 = vector.load %arg2[%c0, %c0_1, %c0_2] : memref<1x4x128xf32, #tpu.memory_space<vmem>>, vector<1x4x128xf32>
    %4 = vector.shape_cast %3 : vector<1x4x128xf32> to vector<4x128xf32>
    %cst = arith.constant 9.99999997E-7 : f32
    %5 = vector.broadcast %cst : f32 to vector<4x128xf32>
    %6 = arith.maximumf %4, %5 : vector<4x128xf32>
    %7 = arith.mulf %6, %6 : vector<4x128xf32>
    %8 = arith.mulf %7, %6 : vector<4x128xf32>
    %c0_3 = arith.constant 0 : index
    %c0_4 = arith.constant 0 : index
    %9 = vector.load %arg4[%c0_3, %c0_4] : memref<4x1xf32, #tpu.memory_space<vmem>>, vector<4x1xf32>
    %cst_5 = arith.constant dense<0.000000e+00> : vector<4xf32>
    %10 = vector.multi_reduction <add>, %8, %cst_5 [1] : vector<4x128xf32> to vector<4xf32>
    %11 = vector.shape_cast %10 : vector<4xf32> to vector<4x1xf32>
    %12 = arith.addf %9, %11 : vector<4x1xf32>
    %c0_6 = arith.constant 0 : index
    %c0_7 = arith.constant 0 : index
    %13 = vector.load %arg4[%c0_6, %c0_7] : memref<4x1xf32, #tpu.memory_space<vmem>>, vector<4x1xf32>
    tpu.vector_store %arg4[%c0_6, %c0_7], %12 {strides = array<i32>} : memref<4x1xf32, #tpu.memory_space<vmem>>, vector<4x1xf32>,
    %c1_i32 = arith.constant 1 : i32
    %14 = arith.cmpi eq, %arg1, %c1_i32 : i32
    %15 = arith.extui %14 : i1 to i32
    %c0_i32_8 = arith.constant 0 : i32
    %16 = arith.cmpi ne, %15, %c0_i32_8 : i32
    scf.if %16 {
      %c0_9 = arith.constant 0 : index
      %c0_10 = arith.constant 0 : index
      %17 = vector.load %arg4[%c0_9, %c0_10] : memref<4x1xf32, #tpu.memory_space<vmem>>, vector<4x1xf32>
      %cst_11 = arith.constant 3.906250e-03 : f32
      %18 = vector.broadcast %cst_11 : f32 to vector<4x1xf32>
      %19 = arith.mulf %17, %18 : vector<4x1xf32>
      %20 = math.log %19 : vector<4x1xf32>
      %cst_12 = arith.constant 0.333333343 : f32
      %21 = vector.broadcast %cst_12 : f32 to vector<4x1xf32>
      %22 = arith.mulf %20, %21 : vector<4x1xf32>
      %23 = math.exp %22 : vector<4x1xf32>
      %c0_13 = arith.constant 0 : index
      %c0_14 = arith.constant 0 : index
      %c0_15 = arith.constant 0 : index
      %24 = vector.load %arg3[%c0_13, %c0_14, %c0_15] : memref<1x4x1xf32, #tpu.memory_space<vmem>>, vector<1x4x1xf32>
      %25 = vector.shape_cast %24 : vector<1x4x1xf32> to vector<4x1xf32>
      %26 = vector.shape_cast %23 : vector<4x1xf32> to vector<1x4x1xf32>
      tpu.vector_store %arg3[%c0_13, %c0_14, %c0_15], %26 {strides = array<i32>} : memref<1x4x1xf32, #tpu.memory_space<vmem>>, vector<1x4x1xf32>,
    } else {
    }
    return
  }
  func.func @transform_0(%arg0: i32, %arg1: i32) -> (i32, i32, i32) {
    %c0_i32 = arith.constant 0 : i32
    %c0_i32_0 = arith.constant 0 : i32
    return %arg0, %c0_i32, %arg1 : i32, i32, i32
  }
  func.func @transform_1(%arg0: i32, %arg1: i32) -> (i32, i32, i32) {
    %c0_i32 = arith.constant 0 : i32
    %c0_i32_0 = arith.constant 0 : i32
    %c0_i32_1 = arith.constant 0 : i32
    return %arg0, %c0_i32, %c0_i32_0 : i32, i32, i32
  }
}

</mosaic_0001>

<llo_original>
// kernel: tpu_custom_call.1
$region0: #{tpu_custom_call.1}
  #allocation0 [shape = 'u32[]', space=smem, size = 0x4, offset = 0x4, fixed_abs, tag = 'smem constant byte address 0x4 - core index']
  #allocation1 [shape = 'u32[144,128]{1,0:T(1,128)}', space=vmem, size = 0x12000, scoped, tag = 'internal scratch']
  #allocation2 [shape = 'f32[4,1]{1,0:T(4,128)}', space=vmem, size = 0x800, scoped, tag = 'scratch operand']
  %s0 = inlined_call_operand.hbm [shape: f32[2,4,256], index: 0, kind: input, shape index: {}]
  %s1 = inlined_call_operand.vmem [shape: f32[2,4,1], index: 1, kind: output, shape index: {}]
  %s2 = sld [smem:[#allocation0]]
  $region49: #{tpu_custom_call.1} parent=0
    _
  %s4 = ssub.s32 1, %s2
  %s5 = scalar_select 0, %s4, %s2
  $region1: #{tpu_custom_call.1} parent=0
    #allocation3 [shape = 'u8[4096]{0}', space=vmem, size = 0x1000, scoped, tag = 'input window, operand 0']
    #allocation4 [shape = 's32[2]{0}', space=sflag, size = 0x8, scoped, tag = 'scoped memory for tpu_custom_call.1']
    %6 = vsyncpa [#allocation4], 0
    %s7 = scalar_lea.sflag [#allocation4], 1
    %8 = vsyncpa %s7, 0
    loop: start=0, step=1, limit=6
    $region2: #{tpu_custom_call.1} parent=1 // loop_pre_header
      _
    $region3: #{tpu_custom_call.1} parent=1 // loop_header
      %s10 = sphi 0, %s14
      %p11 = scmp.ge.s32.totalorder %s10, 6
      %s17 = sphi 0, %s29
      %s18 = sphi 0, %s25
      %s19 = sphi 0, %s17
      %s20 = sphi 0, %s18
      %s21 = sphi 0, %s19
      %s22 = sphi 0, %s20
      %s34 = sphi 0, %s36
      %s37 = sphi 0, %s34
      %s38 = sphi 0, %s37
      %s54 = sphi 0, %s38
      %s60 = sphi 0, %s62
      %s63 = sphi 0, %s60
      %s64 = sphi 0, %s63
      %s80 = sphi 0, %s64
    $region4: #{tpu_custom_call.1} parent=1 // loop_header_branch
      %13 = sbr.rel (%p11) target = $region8
    $region5: #{tpu_custom_call.1} parent=1 // loop_body
      %s15 = ssub.s32 %s10, 1
      %s16 = ssub.s32 %s10, 2
      %s23 = sadd.s32 1, %s18
      %p24 = scmp.ge.s32.totalorder %s23, 2
      %s25 = scalar_select %p24, 0, %s23
      %s26 = sadd.s32 1, %s17
      %s27 = scalar_select %p24, %s26, %s17
      %p28 = scmp.ge.s32.totalorder %s27, 2
      %s29 = scalar_select %p28, 0, %s27
      %s30 = ssub.s32 %s17, %s29
      %s31 = ssub.s32 %s18, %s25
      %s32 = sor.u32 %s30, %s31
      %p33 = scmp.eq.s32.totalorder %s32, 0
      %s35 = sadd.s32 %s34, 1
      %s36 = scalar_select %p33, %s34, %s35
      %p39 = pneg %p33
      %p40 = scmp.eq.s32.totalorder %s10, 3
      %p41 = por %p39, %p40
      %p42 = scmp.ne.s32.totalorder %s34, %s37
      %p43 = scmp.eq.s32.totalorder %s10, 0
      %p44 = por %p42, %p43
      %p45 = scmp.ne.s32.totalorder %s34, %s37
      %p46 = scmp.eq.s32.totalorder %s15, 3
      %p47 = por %p45, %p46
      %p48 = scmp.ne.s32.totalorder %s37, %s38
      %p49 = scmp.eq.s32.totalorder %s15, 0
      %p50 = por %p48, %p49
      %p51 = scmp.ne.s32.totalorder %s37, %s38
      %p52 = scmp.eq.s32.totalorder %s16, 3
      %p53 = por %p51, %p52
      %p55 = scmp.ne.s32.totalorder %s38, %s54
      %p56 = scmp.eq.s32.totalorder %s16, 0
      %p57 = por %p55, %p56
      %s58 = ssub.s32 %s17, %s29
      %p59 = scmp.eq.s32.totalorder %s58, 0
      %s61 = sadd.s32 %s60, 1
      %s62 = scalar_select %p59, %s60, %s61
      %p65 = pneg %p59
      %p66 = scmp.eq.s32.totalorder %s10, 3
      %p67 = por %p65, %p66
      %p68 = scmp.ne.s32.totalorder %s60, %s63
      %p69 = scmp.eq.s32.totalorder %s10, 0
      %p70 = por %p68, %p69
      %p71 = scmp.ne.s32.totalorder %s60, %s63
      %p72 = scmp.eq.s32.totalorder %s15, 3
      %p73 = por %p71, %p72
      %p74 = scmp.ne.s32.totalorder %s63, %s64
      %p75 = scmp.eq.s32.totalorder %s15, 0
      %p76 = por %p74, %p75
      %p77 = scmp.ne.s32.totalorder %s63, %s64
      %p78 = scmp.eq.s32.totalorder %s16, 3
      %p79 = por %p77, %p78
      %p81 = scmp.ne.s32.totalorder %s64, %s80
      %p82 = scmp.eq.s32.totalorder %s16, 0
      %p83 = por %p81, %p82
      %p84 = scmp.le.s32.totalorder 1, %s10
      %p85 = scmp.lt.s32.totalorder %s10, 5
      %p86 = pnand %p84, %p85
      %p87 = pneg %p86
      // Predicated region
      $region9: #{tpu_custom_call.1} parent=5 // pred_check
        _
      $region10: #{tpu_custom_call.1} parent=5 // pred_check_branch
        %89 = sbr.rel (%p86) target = $region12
      $region11: #{tpu_custom_call.1} parent=5 // pred_region
        %s90 = ssub.s32 %s10, 1
      $region12: #{tpu_custom_call.1} parent=5 // pred_fallthru
        _
      %p91 = scmp.lt.s32.totalorder %s10, 4
      // Predicated region
      $region13: #{tpu_custom_call.1} parent=5 // pred_check
        %p92 = pneg %p91
      $region14: #{tpu_custom_call.1} parent=5 // pred_check_branch
        %94 = sbr.rel (%p92) target = $region16
      $region15: #{tpu_custom_call.1} parent=5 // pred_region
        // Predicated region
        $region17: #{tpu_custom_call.1} parent=15 // pred_check
          %p95 = pneg %p44
        $region18: #{tpu_custom_call.1} parent=15 // pred_check_branch
          %97 = sbr.rel (%p95) target = $region20
        $region19: #{tpu_custom_call.1} parent=15 // pred_region
          %s98 = sand.u32 %s34, 1
          %s99 = scalar_lea.sflag [#allocation4], %s98
          %s100 = sand.u32 %s34, 1
          %s101 = smul.addr %s100, 4
          %s102 = scalar_lea.vmem [#allocation3], %s101
          %s104 = ssub.s32 64, 64
          %105 = vsyncadd %s99, %s104
          %s106 = smul.addr %s17, 2
          %s107 = sadd.s32 %s18, %s106
          %s108 = smul.addr %s107, 64
          %s109 = scalar_lea.hbm %s0, %s108
          %s111 = sshll.u32 %s102, 4
          %s112 = int_to_ptr.vmem [resolvable:$true] %s111
          %114 = dma.hbm_to_vmem [thread:$0]  %s109, 64, %s112, %s99
        $region20: #{tpu_custom_call.1} parent=15 // pred_fallthru
          _
      $region16: #{tpu_custom_call.1} parent=5 // pred_fallthru
        _
      %p115 = scmp.le.s32.totalorder 1, %s10
      %p116 = scmp.lt.s32.totalorder %s10, 5
      %p117 = pnand %p115, %p116
      %p118 = pneg %p117
      // Predicated region
      $region21: #{tpu_custom_call.1} parent=5 // pred_check
        _
      $region22: #{tpu_custom_call.1} parent=5 // pred_check_branch
        %120 = sbr.rel (%p117) target = $region24
      $region23: #{tpu_custom_call.1} parent=5 // pred_region
        %s121 = ssub.s32 %s10, 1
        %s122 = sand.u32 %s37, 1
        %s123 = scalar_lea.sflag [#allocation4], %s122
        %s124 = sand.u32 %s37, 1
        %s125 = smul.addr %s124, 4
        %s126 = scalar_lea.vmem [#allocation3], %s125
        // Predicated region
        $region25: #{tpu_custom_call.1} parent=23 // pred_check
          %p127 = pneg %p50
        $region26: #{tpu_custom_call.1} parent=23 // pred_check_branch
          %129 = sbr.rel (%p127) target = $region28
        $region27: #{tpu_custom_call.1} parent=23 // pred_region
          %130 = dma.done %s123, 64
        $region28: #{tpu_custom_call.1} parent=23 // pred_fallthru
          _
        %s131 = sand.u32 %s37, 1
        %s132 = scalar_lea.sflag [#allocation4], %s131
        %s133 = sand.u32 %s37, 1
        %s134 = smul.addr %s133, 4
        %s135 = scalar_lea.vmem [#allocation3], %s134
        %p136 = pneg %p50
        %p137 = pneg %p47
        %p138 = pneg %p76
        %p139 = pneg %p73
        %p140 = scmp.lt.s32.totalorder %s19, 1
        %s141 = scalar_select %p140, %s19, 1
        %s142 = smul.addr %s141, 4
        %s143 = scalar_lea.vmem %s1, %s142
        %p144 = scmp.lt.s32.totalorder %s19, 1
        %s145 = scalar_select %p144, %s19, 1
        %s146 = smul.addr %s145, 4
        %s147 = scalar_lea.vmem %s1, %s146
        %p148 = scmp.eq.s32.totalorder %s20, 0
        // Predicated region
        $region29: #{tpu_custom_call.1} parent=23 // pred_check
          %p149 = pneg %p148
        $region30: #{tpu_custom_call.1} parent=23 // pred_check_branch
          %151 = sbr.rel (%p149) target = $region32
        $region31: #{tpu_custom_call.1} parent=23 // pred_region
          %vm152 = vcmask 3072
          %153 = vst.msk [vmem:[#allocation2] sm:$0xf] %vm152, 0.0
        $region32: #{tpu_custom_call.1} parent=23 // pred_fallthru
          _
        %v154 = vld [vmem:[%s126] sm:$0xf]
        %v155 = vmax.f32 %v154, 1e-06
        %v156 = vmul.f32 %v155, %v155
        %v157 = vmul.f32 %v156, %v155
        %v158 = vld [vmem:[#allocation2] sm:$0xf]
        %vm159 = vcmask 1043456
        %v160 = vsel %vm159, %v157, 0.0
        %161 = vadd.xlane.f32.xlu0 %v160
        %v162 = vpop.xlane.xlu0 %161
        %v163 = vadd.f32 %v158, %v162
        %vm164 = vcmask 3072
        %165 = vst.msk [vmem:[#allocation2] sm:$0xf] %vm164, %v163
        %p166 = scmp.eq.s32.totalorder %s20, 1
        // Predicated region
        $region33: #{tpu_custom_call.1} parent=23 // pred_check
          %p167 = pneg %p166
        $region34: #{tpu_custom_call.1} parent=23 // pred_check_branch
          %169 = sbr.rel (%p167) target = $region36
        $region35: #{tpu_custom_call.1} parent=23 // pred_region
          %v170 = vld [vmem:[#allocation2] sm:$0xf]
          %v171 = vmul.f32 %v170, 0.00390625
          %v172 = vlog2.pop %v171
          %v173 = vmul.f32 %v172, 0.6931472
          %v174 = vmul.f32 %v173, 0.33333334
          %v175 = vmul.f32 %v174, 1.442695
          %v176 = vpow.pop %v175
          %177 = vst.msk [vmem:[%s147] sm:$0xf] %vm164, %v176
        $region36: #{tpu_custom_call.1} parent=23 // pred_fallthru
          _
        %p178 = scmp.lt.s32.totalorder %s19, 1
        %s179 = scalar_select %p178, %s19, 1
        %s180 = smul.addr %s179, 4
        %s181 = scalar_lea.vmem %s1, %s180
        // Predicated region
        $region37: #{tpu_custom_call.1} parent=23 // pred_check
          %p182 = pneg %p73
        $region38: #{tpu_custom_call.1} parent=23 // pred_check_branch
          %184 = sbr.rel (%p182) target = $region40
        $region39: #{tpu_custom_call.1} parent=23 // pred_region
          _
        $region40: #{tpu_custom_call.1} parent=23 // pred_fallthru
          _
      $region24: #{tpu_custom_call.1} parent=5 // pred_fallthru
        _
      %p185 = scmp.le.s32.totalorder 2, %s10
      // Predicated region
      $region41: #{tpu_custom_call.1} parent=5 // pred_check
        %p186 = pneg %p185
      $region42: #{tpu_custom_call.1} parent=5 // pred_check_branch
        %188 = sbr.rel (%p186) target = $region44
      $region43: #{tpu_custom_call.1} parent=5 // pred_region
        %s189 = ssub.s32 %s10, 2
        // Predicated region
        $region45: #{tpu_custom_call.1} parent=43 // pred_check
          %p190 = pneg %p79
        $region46: #{tpu_custom_call.1} parent=43 // pred_check_branch
          %192 = sbr.rel (%p190) target = $region48
        $region47: #{tpu_custom_call.1} parent=43 // pred_region
          %p193 = scmp.lt.s32.totalorder %s21, 1
          %s194 = scalar_select %p193, %s21, 1
          %s195 = smul.addr %s194, 4
          %s196 = scalar_lea.vmem %s1, %s195
        $region48: #{tpu_custom_call.1} parent=43 // pred_fallthru
          _
      $region44: #{tpu_custom_call.1} parent=5 // pred_fallthru
        _
    $region6: #{tpu_custom_call.1} parent=1 // loop_footer
      %s14 = sadd.s32 1, %s10
    $region7: #{tpu_custom_call.1} parent=1 // loop_footer_branch
      %9 = sbr.rel target = $region3
    $region8: #{tpu_custom_call.1} parent=1 // loop_exit
      _
    %197 = vsyncpa [#allocation4], 1
    %s198 = scalar_lea.sflag [#allocation4], 1
    %199 = vsyncpa %s198, 1

</llo_original>
